<compile_context>
chip_gen: v7x
topology: tpu7x:2x2x1
jax: 0.10.0
libtpu: 0.0.40
codegen_flags: <defaults>
</compile_context>

<pallas_src>
import functools

import jax
import jax.numpy as jnp
from jax.experimental import pallas as pl
from jax.experimental.pallas import tpu as pltpu


def _rownorm(v):
    # F.normalize(v, dim=-1): v / clamp_min(||v||, 1e-12)
    #   == v * rsqrt(clamp_min(||v||^2, 1e-24))   (rsqrt: EUP, no divide)
    ss = jnp.sum(v * v, axis=-1, keepdims=True)
    return v * jax.lax.rsqrt(jnp.maximum(ss, 1e-24))


def macrid_kernel(x_ref, items_ref, cores_ref, w1_ref, b1_ref, w2_ref, b2_ref,
                  logits_ref, recon_ref, kl_ref,
                  slab_ref, *, kfac, dfac, batch, tau):
    inv_tau = 1.0 / tau

    x = x_ref[...]                          # (B, N)
    items_n = _rownorm(items_ref[...])      # (N, D)
    cores_n = _rownorm(cores_ref[...])      # (K, D)

    # cates^T = softmax_K(cores_n @ items_n^T / tau) -> (K, N); computed once,
    # n_items stays on the lane axis (no in-kernel transpose).
    cates_logits_t = jax.lax.dot_general(
        cores_n, items_n, (((1,), (1,)), ((), ())),
        preferred_element_type=jnp.float32) * inv_tau
    m = jnp.max(cates_logits_t, axis=0, keepdims=True)
    e = jnp.exp(cates_logits_t - m)
    cates_t = e * pl.reciprocal(jnp.sum(e, axis=0, keepdims=True), approx=True)

    # Build the (K*B, N) encoder-input slab: rows k*B:(k+1)*B = x * cates_k.
    for k in range(kfac):
        slab_ref[k * batch:(k + 1) * batch, :] = x * cates_t[k:k + 1, :]

    # Row-normalize the whole slab at once; dropout(training=False) = identity.
    h = _rownorm(slab_ref[...])             # (K*B, N)

    # Single batched encoder for all K factors.
    h1 = jnp.tanh(
        jnp.dot(h, w1_ref[...], preferred_element_type=jnp.float32)
        + b1_ref[...])                      # (K*B, D)
    h2 = (jnp.dot(h1, w2_ref[...], preferred_element_type=jnp.float32)
          + b2_ref[...])                    # (K*B, 2D)

    mu = _rownorm(h2[:, :dfac])             # (K*B, D)
    lnvar = -h2[:, dfac:]                   # (K*B, D)
    # sum_k 0.5 * mean_B(sum_D(-lnvar + exp(lnvar) - 1))
    #   == 0.5/B * sum over all (K*B, D) elements.
    kl = (0.5 / batch) * jnp.sum(jnp.exp(lnvar) - lnvar - 1.0)

    # eval: z_k = mu_k + 0; the second F.normalize is an identity on unit rows.
    big_logits = jax.lax.dot_general(
        mu, items_n, (((1,), (1,)), ((), ())),
        preferred_element_type=jnp.float32) * inv_tau    # (K*B, N)

    probs = jnp.exp(big_logits[0:batch, :]) * cates_t[0:1, :]
    for k in range(1, kfac):
        probs = probs + (jnp.exp(big_logits[k * batch:(k + 1) * batch, :])
                         * cates_t[k:k + 1, :])          # (B, N)

    # log_softmax(log(probs)) == log(probs) - log(rowsum(probs))  (probs > 0)
    ls = jnp.log(probs) - jnp.log(jnp.sum(probs, axis=1, keepdims=True))
    logits_ref[...] = ls
    recon_ref[0, 0] = -(1.0 / batch) * jnp.sum(ls * x)
    kl_ref[0, 0] = kl


def macrid_vae_forward(x, w1, b1, w2, b2, items, cores, *, tau):
    """x: (B, n_items). w1: (dfac, n_items), w2: (2*dfac, dfac) (torch (out,in))."""
    B, N = x.shape
    K, D = cores.shape
    w1_t = jnp.transpose(w1)                 # (N, D)
    w2_t = jnp.transpose(w2)                 # (D, 2D)
    b1_r = b1.reshape(1, D)
    b2_r = b2.reshape(1, 2 * D)

    kernel = functools.partial(macrid_kernel, kfac=K, dfac=D, batch=B, tau=tau)

    out_shape = (
        jax.ShapeDtypeStruct((B, N), jnp.float32),   # log-softmax logits
        jax.ShapeDtypeStruct((1, 1), jnp.float32),   # recon loss (scalar)
        jax.ShapeDtypeStruct((1, 1), jnp.float32),   # kl (scalar)
    )
    vmem = pl.BlockSpec(memory_space=pltpu.MemorySpace.VMEM)
    smem = pl.BlockSpec(memory_space=pltpu.MemorySpace.SMEM)

    logits, recon, kl = pl.pallas_call(
        kernel,
        out_shape=out_shape,
        in_specs=[vmem, vmem, vmem, vmem, vmem, vmem, vmem],
        out_specs=(vmem, smem, smem),
        scratch_shapes=[pltpu.VMEM((K * B, N), jnp.float32)],   # encoder slab
    )(x, items, cores, w1_t, b1_r, w2_t, b2_r)

    # generate_reg(): sum of L2 (Frobenius) norms of all parameters (JAX glue).
    reg = sum(jnp.linalg.norm(p) for p in (w1, b1, w2, b2, items, cores))
    return logits, recon[0, 0], kl[0, 0], reg


def macrid_vae_reference(x, w1, b1, w2, b2, items, cores, *, tau):
    """Pure-JAX reference of the eval forward pass."""
    K, D = cores.shape

    def l2n(v):
        n = jnp.sqrt(jnp.sum(v * v, axis=-1, keepdims=True))
        return v / jnp.maximum(n, 1e-12)

    items_n = l2n(items)
    cores_n = l2n(cores)
    cates_logits = jnp.dot(items_n, cores_n.T) / tau
    cates = jax.nn.softmax(cates_logits, axis=1)
    probs = 0.0
    kl = 0.0
    for k in range(K):
        cates_k = cates[:, k][None, :]
        x_k = x * cates_k
        h = l2n(x_k)
        h1 = jnp.tanh(jnp.dot(h, w1.T) + b1)
        h2 = jnp.dot(h1, w2.T) + b2
        mu = l2n(h2[:, :D])
        lnvar = -h2[:, D:]
        kl = kl + 0.5 * jnp.mean(jnp.sum(-lnvar + jnp.exp(lnvar) - 1.0, axis=1))
        z = l2n(mu)
        logits_k = jnp.dot(z, items_n.T) / tau
        probs = probs + jnp.exp(logits_k) * cates_k
    lg = jnp.log(probs)
    ls = jax.nn.log_softmax(lg, axis=1)
    recon = jnp.mean(jnp.sum(-ls * x, axis=-1))
    reg = sum(jnp.linalg.norm(p) for p in (w1, b1, w2, b2, items, cores))
    return ls, recon, kl, reg


if __name__ == "__main__":
    # Small shapes consistent with MacridVAE: n_items items, dfac latent dim,
    # kfac disentangled factors, batch of B user interaction rows.
    B, N, D, K = 8, 256, 128, 4
    TAU = 0.1

    key = jax.random.PRNGKey(0)
    k1, k2, k3, k4, k5, k6, k7 = jax.random.split(key, 7)

    # Deterministic parameter init mirroring the module's init scheme.
    bound1 = (6.0 / (N + D)) ** 0.5
    w1 = jax.random.uniform(k1, (D, N), jnp.float32, -bound1, bound1)       # Linear(N, D).weight
    b1 = jax.random.normal(k2, (D,), jnp.float32) * 0.001
    bound2 = (6.0 / (D + 2 * D)) ** 0.5
    w2 = jax.random.uniform(k3, (2 * D, D), jnp.float32, -bound2, bound2)   # Linear(D, 2D).weight
    b2 = jax.random.normal(k4, (2 * D,), jnp.float32) * 0.001
    bi = (6.0 / (N + D)) ** 0.5
    items = jax.random.uniform(k5, (N, D), jnp.float32, -bi, bi)
    bc = (6.0 / (K + D)) ** 0.5
    cores = jax.random.uniform(k6, (K, D), jnp.float32, -bc, bc)

    # Binary user-item interaction matrix.
    x = (jax.random.uniform(k7, (B, N)) < 0.1).astype(jnp.float32)

    logits, recon, kl, reg = macrid_vae_forward(
        x, w1, b1, w2, b2, items, cores, tau=TAU)
    jax.block_until_ready((logits, recon, kl, reg))

    # Sanity check against the pure-JAX reference.
    ls_ref, recon_ref, kl_ref, reg_ref = macrid_vae_reference(
        x, w1, b1, w2, b2, items, cores, tau=TAU)
    assert logits.shape == (B, N)
    assert bool(jnp.all(jnp.isfinite(logits)))
    assert jnp.allclose(logits, ls_ref, atol=2e-2, rtol=2e-2)
    assert jnp.allclose(recon, recon_ref, atol=2e-2, rtol=2e-2)
    assert jnp.allclose(kl, kl_ref, atol=2e-2, rtol=2e-2)
    assert jnp.allclose(reg, reg_ref, atol=1e-3, rtol=1e-3)

    print("KERNEL_OK")
</pallas_src>

<mosaic_0001>
module attributes {stable_mosaic.version = 11 : i64} {
  func.func @macrid_kernel(%arg0: memref<8x256xf32, #tpu.memory_space<vmem>>, %arg1: memref<256x128xf32, #tpu.memory_space<vmem>>, %arg2: memref<4x128xf32, #tpu.memory_space<vmem>>, %arg3: memref<256x128xf32, #tpu.memory_space<vmem>>, %arg4: memref<1x128xf32, #tpu.memory_space<vmem>>, %arg5: memref<128x256xf32, #tpu.memory_space<vmem>>, %arg6: memref<1x256xf32, #tpu.memory_space<vmem>>, %arg7: memref<8x256xf32, #tpu.memory_space<vmem>>, %arg8: memref<1x1xf32, #tpu.memory_space<smem>>, %arg9: memref<1x1xf32, #tpu.memory_space<smem>>, %arg10: memref<32x256xf32, #tpu.memory_space<vmem>>) attributes {dimension_semantics = [], scalar_prefetch = 0 : i64, scratch_operands = 1 : i64, tpu.core_type = #tpu.core_type<tc>} {
    %c0 = arith.constant 0 : index
    %c0_0 = arith.constant 0 : index
    %0 = vector.load %arg0[%c0, %c0_0] : memref<8x256xf32, #tpu.memory_space<vmem>>, vector<8x256xf32>
    %c0_1 = arith.constant 0 : index
    %c0_2 = arith.constant 0 : index
    %1 = vector.load %arg1[%c0_1, %c0_2] : memref<256x128xf32, #tpu.memory_space<vmem>>, vector<256x128xf32>
    %2 = arith.mulf %1, %1 : vector<256x128xf32>
    %cst = arith.constant dense<0.000000e+00> : vector<256xf32>
    %3 = vector.multi_reduction <add>, %2, %cst [1] : vector<256x128xf32> to vector<256xf32>
    %4 = vector.shape_cast %3 : vector<256xf32> to vector<256x1xf32>
    %cst_3 = arith.constant 1.000000e-24 : f32
    %5 = vector.broadcast %cst_3 : f32 to vector<256x1xf32>
    %6 = arith.maximumf %4, %5 : vector<256x1xf32>
    %7 = math.rsqrt %6 : vector<256x1xf32>
    %8 = vector.broadcast %7 : vector<256x1xf32> to vector<256x128xf32>
    %9 = arith.mulf %1, %8 : vector<256x128xf32>
    %c0_4 = arith.constant 0 : index
    %c0_5 = arith.constant 0 : index
    %10 = vector.load %arg2[%c0_4, %c0_5] : memref<4x128xf32, #tpu.memory_space<vmem>>, vector<4x128xf32>
    %11 = arith.mulf %10, %10 : vector<4x128xf32>
    %cst_6 = arith.constant dense<0.000000e+00> : vector<4xf32>
    %12 = vector.multi_reduction <add>, %11, %cst_6 [1] : vector<4x128xf32> to vector<4xf32>
    %13 = vector.shape_cast %12 : vector<4xf32> to vector<4x1xf32>
    %cst_7 = arith.constant 1.000000e-24 : f32
    %14 = vector.broadcast %cst_7 : f32 to vector<4x1xf32>
    %15 = arith.maximumf %13, %14 : vector<4x1xf32>
    %16 = math.rsqrt %15 : vector<4x1xf32>
    %17 = vector.broadcast %16 : vector<4x1xf32> to vector<4x128xf32>
    %18 = arith.mulf %10, %17 : vector<4x128xf32>
    %cst_8 = arith.constant dense<0.000000e+00> : vector<4x256xf32>
    %19 = tpu.matmul %18, %9, %cst_8 {dimension_numbers = #tpu.dot_dimension_numbers<[1], [1], [0], [0], [0, 0, 1, 0], [], []>} : vector<4x128xf32>, vector<256x128xf32>, vector<4x256xf32> -> vector<4x256xf32>
    %cst_9 = arith.constant 1.000000e+01 : f32
    %20 = vector.broadcast %cst_9 : f32 to vector<4x256xf32>
    %21 = arith.mulf %19, %20 : vector<4x256xf32>
    %cst_10 = arith.constant dense<0xFF800000> : vector<256xf32>
    %22 = vector.multi_reduction <maximumf>, %21, %cst_10 [0] : vector<4x256xf32> to vector<256xf32>
    %23 = vector.shape_cast %22 : vector<256xf32> to vector<1x256xf32>
    %24 = vector.broadcast %23 : vector<1x256xf32> to vector<4x256xf32>
    %25 = arith.subf %21, %24 : vector<4x256xf32>
    %26 = math.exp %25 : vector<4x256xf32>
    %cst_11 = arith.constant dense<0.000000e+00> : vector<256xf32>
    %27 = vector.multi_reduction <add>, %26, %cst_11 [0] : vector<4x256xf32> to vector<256xf32>
    %28 = vector.shape_cast %27 : vector<256xf32> to vector<1x256xf32>
    %29 = tpu.reciprocal %28 {approx = true} : vector<1x256xf32> -> vector<1x256xf32>
    %30 = vector.broadcast %29 : vector<1x256xf32> to vector<4x256xf32>
    %31 = arith.mulf %26, %30 : vector<4x256xf32>
    %32 = vector.extract_strided_slice %31 {offsets = [0, 0], sizes = [1, 256], strides = [1, 1]} : vector<4x256xf32> to vector<1x256xf32>
    %33 = vector.broadcast %32 : vector<1x256xf32> to vector<8x256xf32>
    %34 = arith.mulf %0, %33 : vector<8x256xf32>
    %c0_12 = arith.constant 0 : index
    %c0_13 = arith.constant 0 : index
    %35 = vector.load %arg10[%c0_12, %c0_13] : memref<32x256xf32, #tpu.memory_space<vmem>>, vector<8x256xf32>
    tpu.vector_store %arg10[%c0_12, %c0_13], %34 {strides = array<i32>} : memref<32x256xf32, #tpu.memory_space<vmem>>, vector<8x256xf32>,
    %36 = vector.extract_strided_slice %31 {offsets = [1, 0], sizes = [1, 256], strides = [1, 1]} : vector<4x256xf32> to vector<1x256xf32>
    %37 = vector.broadcast %36 : vector<1x256xf32> to vector<8x256xf32>
    %38 = arith.mulf %0, %37 : vector<8x256xf32>
    %c8 = arith.constant 8 : index
    %c0_14 = arith.constant 0 : index
    %39 = vector.load %arg10[%c8, %c0_14] : memref<32x256xf32, #tpu.memory_space<vmem>>, vector<8x256xf32>
    tpu.vector_store %arg10[%c8, %c0_14], %38 {strides = array<i32>} : memref<32x256xf32, #tpu.memory_space<vmem>>, vector<8x256xf32>,
    %40 = vector.extract_strided_slice %31 {offsets = [2, 0], sizes = [1, 256], strides = [1, 1]} : vector<4x256xf32> to vector<1x256xf32>
    %41 = vector.broadcast %40 : vector<1x256xf32> to vector<8x256xf32>
    %42 = arith.mulf %0, %41 : vector<8x256xf32>
    %c16 = arith.constant 16 : index
    %c0_15 = arith.constant 0 : index
    %43 = vector.load %arg10[%c16, %c0_15] : memref<32x256xf32, #tpu.memory_space<vmem>>, vector<8x256xf32>
    tpu.vector_store %arg10[%c16, %c0_15], %42 {strides = array<i32>} : memref<32x256xf32, #tpu.memory_space<vmem>>, vector<8x256xf32>,
    %44 = vector.extract_strided_slice %31 {offsets = [3, 0], sizes = [1, 256], strides = [1, 1]} : vector<4x256xf32> to vector<1x256xf32>
    %45 = vector.broadcast %44 : vector<1x256xf32> to vector<8x256xf32>
    %46 = arith.mulf %0, %45 : vector<8x256xf32>
    %c24 = arith.constant 24 : index
    %c0_16 = arith.constant 0 : index
    %47 = vector.load %arg10[%c24, %c0_16] : memref<32x256xf32, #tpu.memory_space<vmem>>, vector<8x256xf32>
    tpu.vector_store %arg10[%c24, %c0_16], %46 {strides = array<i32>} : memref<32x256xf32, #tpu.memory_space<vmem>>, vector<8x256xf32>,
    %c0_17 = arith.constant 0 : index
    %c0_18 = arith.constant 0 : index
    %48 = vector.load %arg10[%c0_17, %c0_18] : memref<32x256xf32, #tpu.memory_space<vmem>>, vector<32x256xf32>
    %49 = arith.mulf %48, %48 : vector<32x256xf32>
    %cst_19 = arith.constant dense<0.000000e+00> : vector<32xf32>
    %50 = vector.multi_reduction <add>, %49, %cst_19 [1] : vector<32x256xf32> to vector<32xf32>
    %51 = vector.shape_cast %50 : vector<32xf32> to vector<32x1xf32>
    %cst_20 = arith.constant 1.000000e-24 : f32
    %52 = vector.broadcast %cst_20 : f32 to vector<32x1xf32>
    %53 = arith.maximumf %51, %52 : vector<32x1xf32>
    %54 = math.rsqrt %53 : vector<32x1xf32>
    %55 = vector.broadcast %54 : vector<32x1xf32> to vector<32x256xf32>
    %56 = arith.mulf %48, %55 : vector<32x256xf32>
    %c0_21 = arith.constant 0 : index
    %c0_22 = arith.constant 0 : index
    %57 = vector.load %arg3[%c0_21, %c0_22] : memref<256x128xf32, #tpu.memory_space<vmem>>, vector<256x128xf32>
    %cst_23 = arith.constant dense<0.000000e+00> : vector<32x128xf32>
    %58 = tpu.matmul %56, %57, %cst_23 {dimension_numbers = #tpu.dot_dimension_numbers<[1], [0], [0], [1], [0, 0, 1, 1], [], []>} : vector<32x256xf32>, vector<256x128xf32>, vector<32x128xf32> -> vector<32x128xf32>
    %c0_24 = arith.constant 0 : index
    %c0_25 = arith.constant 0 : index
    %59 = vector.load %arg4[%c0_24, %c0_25] : memref<1x128xf32, #tpu.memory_space<vmem>>, vector<1x128xf32>
    %60 = vector.broadcast %59 : vector<1x128xf32> to vector<32x128xf32>
    %61 = arith.addf %58, %60 : vector<32x128xf32>
    %62 = math.tanh %61 : vector<32x128xf32>
    %c0_26 = arith.constant 0 : index
    %c0_27 = arith.constant 0 : index
    %63 = vector.load %arg5[%c0_26, %c0_27] : memref<128x256xf32, #tpu.memory_space<vmem>>, vector<128x256xf32>
    %cst_28 = arith.constant dense<0.000000e+00> : vector<32x256xf32>
    %64 = tpu.matmul %62, %63, %cst_28 {dimension_numbers = #tpu.dot_dimension_numbers<[1], [0], [0], [1], [0, 0, 1, 1], [], []>} : vector<32x128xf32>, vector<128x256xf32>, vector<32x256xf32> -> vector<32x256xf32>
    %c0_29 = arith.constant 0 : index
    %c0_30 = arith.constant 0 : index
    %65 = vector.load %arg6[%c0_29, %c0_30] : memref<1x256xf32, #tpu.memory_space<vmem>>, vector<1x256xf32>
    %66 = vector.broadcast %65 : vector<1x256xf32> to vector<32x256xf32>
    %67 = arith.addf %64, %66 : vector<32x256xf32>
    %68 = vector.extract_strided_slice %67 {offsets = [0, 0], sizes = [32, 128], strides = [1, 1]} : vector<32x256xf32> to vector<32x128xf32>
    %69 = arith.mulf %68, %68 : vector<32x128xf32>
    %cst_31 = arith.constant dense<0.000000e+00> : vector<32xf32>
    %70 = vector.multi_reduction <add>, %69, %cst_31 [1] : vector<32x128xf32> to vector<32xf32>
    %71 = vector.shape_cast %70 : vector<32xf32> to vector<32x1xf32>
    %cst_32 = arith.constant 1.000000e-24 : f32
    %72 = vector.broadcast %cst_32 : f32 to vector<32x1xf32>
    %73 = arith.maximumf %71, %72 : vector<32x1xf32>
    %74 = math.rsqrt %73 : vector<32x1xf32>
    %75 = vector.broadcast %74 : vector<32x1xf32> to vector<32x128xf32>
    %76 = arith.mulf %68, %75 : vector<32x128xf32>
    %77 = vector.extract_strided_slice %67 {offsets = [0, 128], sizes = [32, 128], strides = [1, 1]} : vector<32x256xf32> to vector<32x128xf32>
    %cst_33 = arith.constant 0.000000e+00 : f32
    %78 = vector.broadcast %cst_33 : f32 to vector<32x128xf32>
    %79 = arith.subf %78, %77 : vector<32x128xf32>
    %80 = math.exp %79 : vector<32x128xf32>
    %81 = arith.subf %80, %79 : vector<32x128xf32>
    %cst_34 = arith.constant 1.000000e+00 : f32
    %82 = vector.broadcast %cst_34 : f32 to vector<32x128xf32>
    %83 = arith.subf %81, %82 : vector<32x128xf32>
    %84 = vector.shape_cast %83 : vector<32x128xf32> to vector<1x32x128xf32>
    %cst_35 = arith.constant dense<0.000000e+00> : vector<1xf32>
    %85 = vector.multi_reduction <add>, %84, %cst_35 [1, 2] : vector<1x32x128xf32> to vector<1xf32>
    %86 = vector.shape_cast %85 : vector<1xf32> to vector<1x1x1xf32>
    %87 = vector.extract %86[0, 0, 0] : f32 from vector<1x1x1xf32>
    %cst_36 = arith.constant 6.250000e-02 : f32
    %88 = arith.mulf %cst_36, %87 : f32
    %cst_37 = arith.constant dense<0.000000e+00> : vector<32x256xf32>
    %89 = tpu.matmul %76, %9, %cst_37 {dimension_numbers = #tpu.dot_dimension_numbers<[1], [1], [0], [0], [0, 0, 1, 0], [], []>} : vector<32x128xf32>, vector<256x128xf32>, vector<32x256xf32> -> vector<32x256xf32>
    %cst_38 = arith.constant 1.000000e+01 : f32
    %90 = vector.broadcast %cst_38 : f32 to vector<32x256xf32>
    %91 = arith.mulf %89, %90 : vector<32x256xf32>
    %92 = vector.extract_strided_slice %91 {offsets = [0, 0], sizes = [8, 256], strides = [1, 1]} : vector<32x256xf32> to vector<8x256xf32>
    %93 = math.exp %92 : vector<8x256xf32>
    %94 = vector.extract_strided_slice %31 {offsets = [0, 0], sizes = [1, 256], strides = [1, 1]} : vector<4x256xf32> to vector<1x256xf32>
    %95 = vector.broadcast %94 : vector<1x256xf32> to vector<8x256xf32>
    %96 = arith.mulf %93, %95 : vector<8x256xf32>
    %97 = vector.extract_strided_slice %91 {offsets = [8, 0], sizes = [8, 256], strides = [1, 1]} : vector<32x256xf32> to vector<8x256xf32>
    %98 = math.exp %97 : vector<8x256xf32>
    %99 = vector.extract_strided_slice %31 {offsets = [1, 0], sizes = [1, 256], strides = [1, 1]} : vector<4x256xf32> to vector<1x256xf32>
    %100 = vector.broadcast %99 : vector<1x256xf32> to vector<8x256xf32>
    %101 = arith.mulf %98, %100 : vector<8x256xf32>
    %102 = arith.addf %96, %101 : vector<8x256xf32>
    %103 = vector.extract_strided_slice %91 {offsets = [16, 0], sizes = [8, 256], strides = [1, 1]} : vector<32x256xf32> to vector<8x256xf32>
    %104 = math.exp %103 : vector<8x256xf32>
    %105 = vector.extract_strided_slice %31 {offsets = [2, 0], sizes = [1, 256], strides = [1, 1]} : vector<4x256xf32> to vector<1x256xf32>
    %106 = vector.broadcast %105 : vector<1x256xf32> to vector<8x256xf32>
    %107 = arith.mulf %104, %106 : vector<8x256xf32>
    %108 = arith.addf %102, %107 : vector<8x256xf32>
    %109 = vector.extract_strided_slice %91 {offsets = [24, 0], sizes = [8, 256], strides = [1, 1]} : vector<32x256xf32> to vector<8x256xf32>
    %110 = math.exp %109 : vector<8x256xf32>
    %111 = vector.extract_strided_slice %31 {offsets = [3, 0], sizes = [1, 256], strides = [1, 1]} : vector<4x256xf32> to vector<1x256xf32>
    %112 = vector.broadcast %111 : vector<1x256xf32> to vector<8x256xf32>
    %113 = arith.mulf %110, %112 : vector<8x256xf32>
    %114 = arith.addf %108, %113 : vector<8x256xf32>
    %115 = math.log %114 : vector<8x256xf32>
    %cst_39 = arith.constant dense<0.000000e+00> : vector<8xf32>
    %116 = vector.multi_reduction <add>, %114, %cst_39 [1] : vector<8x256xf32> to vector<8xf32>
    %117 = vector.shape_cast %116 : vector<8xf32> to vector<8x1xf32>
    %118 = math.log %117 : vector<8x1xf32>
    %119 = vector.broadcast %118 : vector<8x1xf32> to vector<8x256xf32>
    %120 = arith.subf %115, %119 : vector<8x256xf32>
    %c0_40 = arith.constant 0 : index
    %c0_41 = arith.constant 0 : index
    %121 = vector.load %arg7[%c0_40, %c0_41] : memref<8x256xf32, #tpu.memory_space<vmem>>, vector<8x256xf32>
    tpu.vector_store %arg7[%c0_40, %c0_41], %120 {strides = array<i32>} : memref<8x256xf32, #tpu.memory_space<vmem>>, vector<8x256xf32>,
    %122 = arith.mulf %120, %0 : vector<8x256xf32>
    %123 = vector.shape_cast %122 : vector<8x256xf32> to vector<1x8x256xf32>
    %cst_42 = arith.constant dense<0.000000e+00> : vector<1xf32>
    %124 = vector.multi_reduction <add>, %123, %cst_42 [1, 2] : vector<1x8x256xf32> to vector<1xf32>
    %125 = vector.shape_cast %124 : vector<1xf32> to vector<1x1x1xf32>
    %126 = vector.extract %125[0, 0, 0] : f32 from vector<1x1x1xf32>
    %cst_43 = arith.constant -1.250000e-01 : f32
    %127 = arith.mulf %cst_43, %126 : f32
    %c0_44 = arith.constant 0 : index
    %c0_45 = arith.constant 0 : index
    %128 = memref.load %arg8[%c0_44, %c0_45] : memref<1x1xf32, #tpu.memory_space<smem>>
    memref.store %127, %arg8[%c0_44, %c0_45] : memref<1x1xf32, #tpu.memory_space<smem>>
    %c0_46 = arith.constant 0 : index
    %c0_47 = arith.constant 0 : index
    %129 = memref.load %arg9[%c0_46, %c0_47] : memref<1x1xf32, #tpu.memory_space<smem>>
    memref.store %88, %arg9[%c0_46, %c0_47] : memref<1x1xf32, #tpu.memory_space<smem>>
    return
  }
}

</mosaic_0001>

<llo_original>
// kernel: tpu_custom_call.1
$region0: #{tpu_custom_call.1}
  #allocation0 [shape = 'u32[]', space=smem, size = 0x4, offset = 0x4, fixed_abs, tag = 'smem constant byte address 0x4 - core index']
  #allocation1 [shape = 'u32[144,128]{1,0:T(1,128)}', space=vmem, size = 0x12000, scoped, tag = 'internal scratch']
  #allocation2 [shape = 'f32[32,256]{1,0:T(8,128)}', space=vmem, size = 0x8000, scoped, tag = 'scratch operand']
  %s0 = inlined_call_operand.hbm [shape: f32[8,256], index: 0, kind: input, shape index: {}]
  %s1 = inlined_call_operand.hbm [shape: f32[256,128], index: 1, kind: input, shape index: {}]
  %s2 = inlined_call_operand.vmem [shape: f32[4,128], index: 2, kind: input, shape index: {}]
  %s3 = inlined_call_operand.hbm [shape: f32[256,128], index: 3, kind: input, shape index: {}]
  %s4 = inlined_call_operand.vmem [shape: f32[1,128], index: 4, kind: input, shape index: {}]
  %s5 = inlined_call_operand.hbm [shape: f32[128,256], index: 5, kind: input, shape index: {}]
  %s6 = inlined_call_operand.vmem [shape: f32[1,256], index: 6, kind: input, shape index: {}]
  %s7 = inlined_call_operand.hbm [shape: f32[8,256], index: 7, kind: output, shape index: {0}]
  %s8 = inlined_call_operand.hbm [shape: f32[1,1], index: 8, kind: output, shape index: {1}]
  %s9 = inlined_call_operand.hbm [shape: f32[1,1], index: 9, kind: output, shape index: {2}]
  %10 = xla_tuple %s7, %s8, %s9
  %s11 = sld [smem:[#allocation0]]
  $region70: #{tpu_custom_call.1} parent=0
    _
  %s13 = ssub.s32 1, %s11
  %s14 = scalar_select 0, %s13, %s11
  $region1: #{tpu_custom_call.1} parent=0
    #allocation3 [shape = 'u8[8192]{0}', space=vmem, size = 0x2000, scoped, tag = 'input window, operand 0, single buffered']
    #allocation4 [shape = 's32[1]{0}', space=sflag, size = 0x4, scoped, tag = 'scoped memory for tpu_custom_call.1']
    #allocation5 [shape = 's32[1]{0}', space=sflag, size = 0x4, scoped, tag = 'scoped memory for tpu_custom_call.1']
    #allocation6 [shape = 's32[1]{0}', space=sflag, size = 0x4, scoped, tag = 'scoped memory for tpu_custom_call.1']
    #allocation7 [shape = 'u8[131072]{0}', space=vmem, size = 0x20000, scoped, tag = 'input window, operand 1, single buffered']
    #allocation8 [shape = 's32[1]{0}', space=sflag, size = 0x4, scoped, tag = 'scoped memory for tpu_custom_call.1']
    #allocation9 [shape = 'u8[131072]{0}', space=vmem, size = 0x20000, scoped, tag = 'input window, operand 3, single buffered']
    #allocation10 [shape = 'u8[131072]{0}', space=vmem, size = 0x20000, scoped, tag = 'input window, operand 5, single buffered']
    #allocation11 [shape = 's32[1]{0}', space=sflag, size = 0x4, scoped, tag = 'scoped memory for tpu_custom_call.1']
    #allocation12 [shape = 'u8[8192]{0}', space=vmem, size = 0x2000, scoped, tag = 'output window, operand 0, single buffered']
    #allocation13 [shape = 'u8[512]{0}', space=smem, size = 0x200, scoped, tag = 'output window, operand 1, single buffered']
    #allocation14 [shape = 'u8[512]{0}', space=smem, size = 0x200, scoped, tag = 'output window, operand 2, single buffered']
    #allocation15 [shape = 's32[1]{0}', space=sflag, size = 0x4, scoped, tag = 'scoped memory for tpu_custom_call.1']
    %15 = vsyncpa [#allocation4], 0
    %16 = vsyncpa [#allocation8], 0
    %17 = vsyncpa [#allocation11], 0
    %18 = vsyncpa [#allocation5], 0
    %19 = vsyncpa [#allocation6], 0
    %20 = vsyncpa [#allocation15], 0
    // Predicated region
    $region2: #{tpu_custom_call.1} parent=1 // pred_check
      _
    $region3: #{tpu_custom_call.1} parent=1 // pred_check_branch
      %22 = sbr.rel (0) target = $region5
    $region4: #{tpu_custom_call.1} parent=1 // pred_region
      %s24 = ssub.s32 256, 256
      %25 = vsyncadd [#allocation4], %s24
      %s27 = sshll.u32 [#allocation3], 4
      %s28 = int_to_ptr.vmem [resolvable:$true] %s27
      %30 = dma.hbm_to_vmem [thread:$0]  %s0, 256, %s28, [#allocation4]
    $region5: #{tpu_custom_call.1} parent=1 // pred_fallthru
      _
    // Predicated region
    $region6: #{tpu_custom_call.1} parent=1 // pred_check
      _
    $region7: #{tpu_custom_call.1} parent=1 // pred_check_branch
      %32 = sbr.rel (0) target = $region9
    $region8: #{tpu_custom_call.1} parent=1 // pred_region
      %s34 = ssub.s32 4096, 4096
      %35 = vsyncadd [#allocation8], %s34
      %s36 = sshll.u32 [#allocation7], 4
      %s37 = int_to_ptr.vmem [resolvable:$true] %s36
      %42 = dma.hbm_to_vmem [thread:$0]  %s1, 4096, %s37, [#allocation8], 128, 128, 8
    $region9: #{tpu_custom_call.1} parent=1 // pred_fallthru
      _
    // Predicated region
    $region10: #{tpu_custom_call.1} parent=1 // pred_check
      _
    $region11: #{tpu_custom_call.1} parent=1 // pred_check_branch
      %44 = sbr.rel (0) target = $region13
    $region12: #{tpu_custom_call.1} parent=1 // pred_region
      _
    $region13: #{tpu_custom_call.1} parent=1 // pred_fallthru
      _
    // Predicated region
    $region14: #{tpu_custom_call.1} parent=1 // pred_check
      _
    $region15: #{tpu_custom_call.1} parent=1 // pred_check_branch
      %46 = sbr.rel (0) target = $region17
    $region16: #{tpu_custom_call.1} parent=1 // pred_region
      %s48 = ssub.s32 4096, 4096
      %49 = vsyncadd [#allocation8], %s48
      %s50 = sshll.u32 [#allocation9], 4
      %s51 = int_to_ptr.vmem [resolvable:$true] %s50
      %56 = dma.hbm_to_vmem [thread:$0]  %s3, 4096, %s51, [#allocation8], 128, 128, 8
    $region17: #{tpu_custom_call.1} parent=1 // pred_fallthru
      _
    // Predicated region
    $region18: #{tpu_custom_call.1} parent=1 // pred_check
      _
    $region19: #{tpu_custom_call.1} parent=1 // pred_check_branch
      %58 = sbr.rel (0) target = $region21
    $region20: #{tpu_custom_call.1} parent=1 // pred_region
      _
    $region21: #{tpu_custom_call.1} parent=1 // pred_fallthru
      _
    // Predicated region
    $region22: #{tpu_custom_call.1} parent=1 // pred_check
      _
    $region23: #{tpu_custom_call.1} parent=1 // pred_check_branch
      %60 = sbr.rel (0) target = $region25
    $region24: #{tpu_custom_call.1} parent=1 // pred_region
      %s62 = ssub.s32 4096, 4096
      %63 = vsyncadd [#allocation11], %s62
      %s64 = sshll.u32 [#allocation10], 4
      %s65 = int_to_ptr.vmem [resolvable:$true] %s64
      %70 = dma.hbm_to_vmem [thread:$0]  %s5, 4096, %s65, [#allocation11], 256, 256, 16
    $region25: #{tpu_custom_call.1} parent=1 // pred_fallthru
      _
    // Predicated region
    $region26: #{tpu_custom_call.1} parent=1 // pred_check
      _
    $region27: #{tpu_custom_call.1} parent=1 // pred_check_branch
      %72 = sbr.rel (0) target = $region29
    $region28: #{tpu_custom_call.1} parent=1 // pred_region
      _
    $region29: #{tpu_custom_call.1} parent=1 // pred_fallthru
      _
    // Predicated region
    $region30: #{tpu_custom_call.1} parent=1 // pred_check
      _
    $region31: #{tpu_custom_call.1} parent=1 // pred_check_branch
      %74 = sbr.rel (0) target = $region33
    $region32: #{tpu_custom_call.1} parent=1 // pred_region
      %75 = dma.done [#allocation4], 256
    $region33: #{tpu_custom_call.1} parent=1 // pred_fallthru
      _
    // Predicated region
    $region34: #{tpu_custom_call.1} parent=1 // pred_check
      _
    $region35: #{tpu_custom_call.1} parent=1 // pred_check_branch
      %77 = sbr.rel (0) target = $region37
    $region36: #{tpu_custom_call.1} parent=1 // pred_region
      %78 = dma.done [#allocation8], 4096
    $region37: #{tpu_custom_call.1} parent=1 // pred_fallthru
      _
    // Predicated region
    $region38: #{tpu_custom_call.1} parent=1 // pred_check
      _
    $region39: #{tpu_custom_call.1} parent=1 // pred_check_branch
      %80 = sbr.rel (0) target = $region41
    $region40: #{tpu_custom_call.1} parent=1 // pred_region
      %81 = dma.done [#allocation8], 4096
    $region41: #{tpu_custom_call.1} parent=1 // pred_fallthru
      _
    // Predicated region
    $region42: #{tpu_custom_call.1} parent=1 // pred_check
      _
    $region43: #{tpu_custom_call.1} parent=1 // pred_check_branch
      %83 = sbr.rel (0) target = $region45
    $region44: #{tpu_custom_call.1} parent=1 // pred_region
      %84 = dma.done [#allocation11], 4096
    $region45: #{tpu_custom_call.1} parent=1 // pred_fallthru
      _
    %v85 = vld [vmem:[#allocation3] sm:$0xff]
    %v86 = vld [vmem:[#allocation3 + $0x8] sm:$0xff]
    %v87 = vld [vmem:[#allocation7] sm:$0xff]
    %v88 = vld [vmem:[#allocation7 + $0x8] sm:$0xff]
    %v89 = vld [vmem:[#allocation7 + $0x10] sm:$0xff]
    %v90 = vld [vmem:[#allocation7 + $0x18] sm:$0xff]
    %v91 = vld [vmem:[#allocation7 + $0x20] sm:$0xff]
    %v92 = vld [vmem:[#allocation7 + $0x28] sm:$0xff]
    %v93 = vld [vmem:[#allocation7 + $0x30] sm:$0xff]
    %v94 = vld [vmem:[#allocation7 + $0x38] sm:$0xff]
    %v95 = vld [vmem:[#allocation7 + $0x40] sm:$0xff]
    %v96 = vld [vmem:[#allocation7 + $0x48] sm:$0xff]
    %v97 = vld [vmem:[#allocation7 + $0x50] sm:$0xff]
    %v98 = vld [vmem:[#allocation7 + $0x58] sm:$0xff]
    %v99 = vld [vmem:[#allocation7 + $0x60] sm:$0xff]
    %v100 = vld [vmem:[#allocation7 + $0x68] sm:$0xff]
    %v101 = vld [vmem:[#allocation7 + $0x70] sm:$0xff]
    %v102 = vld [vmem:[#allocation7 + $0x78] sm:$0xff]
    %v103 = vld [vmem:[#allocation7 + $0x80] sm:$0xff]
    %v104 = vld [vmem:[#allocation7 + $0x88] sm:$0xff]
    %v105 = vld [vmem:[#allocation7 + $0x90] sm:$0xff]
    %v106 = vld [vmem:[#allocation7 + $0x98] sm:$0xff]
    %v107 = vld [vmem:[#allocation7 + $0xa0] sm:$0xff]
    %v108 = vld [vmem:[#allocation7 + $0xa8] sm:$0xff]
    %v109 = vld [vmem:[#allocation7 + $0xb0] sm:$0xff]
    %v110 = vld [vmem:[#allocation7 + $0xb8] sm:$0xff]
    %v111 = vld [vmem:[#allocation7 + $0xc0] sm:$0xff]
    %v112 = vld [vmem:[#allocation7 + $0xc8] sm:$0xff]
    %v113 = vld [vmem:[#allocation7 + $0xd0] sm:$0xff]
    %v114 = vld [vmem:[#allocation7 + $0xd8] sm:$0xff]
    %v115 = vld [vmem:[#allocation7 + $0xe0] sm:$0xff]
    %v116 = vld [vmem:[#allocation7 + $0xe8] sm:$0xff]
    %v117 = vld [vmem:[#allocation7 + $0xf0] sm:$0xff]
    %v118 = vld [vmem:[#allocation7 + $0xf8] sm:$0xff]
    %v119 = vmul.f32 %v87, %v87
    %v120 = vmul.f32 %v88, %v88
    %v121 = vmul.f32 %v89, %v89
    %v122 = vmul.f32 %v90, %v90
    %v123 = vmul.f32 %v91, %v91
    %v124 = vmul.f32 %v92, %v92
    %v125 = vmul.f32 %v93, %v93
    %v126 = vmul.f32 %v94, %v94
    %v127 = vmul.f32 %v95, %v95
    %v128 = vmul.f32 %v96, %v96
    %v129 = vmul.f32 %v97, %v97
    %v130 = vmul.f32 %v98, %v98
    %v131 = vmul.f32 %v99, %v99
    %v132 = vmul.f32 %v100, %v100
    %v133 = vmul.f32 %v101, %v101
    %v134 = vmul.f32 %v102, %v102
    %v135 = vmul.f32 %v103, %v103
    %v136 = vmul.f32 %v104, %v104
    %v137 = vmul.f32 %v105, %v105
    %v138 = vmul.f32 %v106, %v106
    %v139 = vmul.f32 %v107, %v107
    %v140 = vmul.f32 %v108, %v108
    %v141 = vmul.f32 %v109, %v109
    %v142 = vmul.f32 %v110, %v110
    %v143 = vmul.f32 %v111, %v111
    %v144 = vmul.f32 %v112, %v112
    %v145 = vmul.f32 %v113, %v113
    %v146 = vmul.f32 %v114, %v114
    %v147 = vmul.f32 %v115, %v115
    %v148 = vmul.f32 %v116, %v116
    %v149 = vmul.f32 %v117, %v117
    %v150 = vmul.f32 %v118, %v118
    %151 = vadd.xlane.f32.xlu0 %v119
    %v152 = vpop.xlane.xlu0 %151
    %153 = vadd.xlane.f32.xlu0 %v120
    %v154 = vpop.xlane.xlu0 %153
    %155 = vadd.xlane.f32.xlu0 %v121
    %v156 = vpop.xlane.xlu0 %155
    %157 = vadd.xlane.f32.xlu0 %v122
    %v158 = vpop.xlane.xlu0 %157
    %159 = vadd.xlane.f32.xlu0 %v123
    %v160 = vpop.xlane.xlu0 %159
    %161 = vadd.xlane.f32.xlu0 %v124
    %v162 = vpop.xlane.xlu0 %161
    %163 = vadd.xlane.f32.xlu0 %v125
    %v164 = vpop.xlane.xlu0 %163
    %165 = vadd.xlane.f32.xlu0 %v126
    %v166 = vpop.xlane.xlu0 %165
    %167 = vadd.xlane.f32.xlu0 %v127
    %v168 = vpop.xlane.xlu0 %167
    %169 = vadd.xlane.f32.xlu0 %v128
    %v170 = vpop.xlane.xlu0 %169
    %171 = vadd.xlane.f32.xlu0 %v129
    %v172 = vpop.xlane.xlu0 %171
    %173 = vadd.xlane.f32.xlu0 %v130
    %v174 = vpop.xlane.xlu0 %173
    %175 = vadd.xlane.f32.xlu0 %v131
    %v176 = vpop.xlane.xlu0 %175
    %177 = vadd.xlane.f32.xlu0 %v132
    %v178 = vpop.xlane.xlu0 %177
    %179 = vadd.xlane.f32.xlu0 %v133
    %v180 = vpop.xlane.xlu0 %179
    %181 = vadd.xlane.f32.xlu0 %v134
    %v182 = vpop.xlane.xlu0 %181
    %183 = vadd.xlane.f32.xlu0 %v135
    %v184 = vpop.xlane.xlu0 %183
    %185 = vadd.xlane.f32.xlu0 %v136
    %v186 = vpop.xlane.xlu0 %185
    %187 = vadd.xlane.f32.xlu0 %v137
    %v188 = vpop.xlane.xlu0 %187
    %189 = vadd.xlane.f32.xlu0 %v138
    %v190 = vpop.xlane.xlu0 %189
    %191 = vadd.xlane.f32.xlu0 %v139
    %v192 = vpop.xlane.xlu0 %191
    %193 = vadd.xlane.f32.xlu0 %v140
    %v194 = vpop.xlane.xlu0 %193
    %195 = vadd.xlane.f32.xlu0 %v141
    %v196 = vpop.xlane.xlu0 %195
    %197 = vadd.xlane.f32.xlu0 %v142
    %v198 = vpop.xlane.xlu0 %197
    %199 = vadd.xlane.f32.xlu0 %v143
    %v200 = vpop.xlane.xlu0 %199
    %201 = vadd.xlane.f32.xlu0 %v144
    %v202 = vpop.xlane.xlu0 %201
    %203 = vadd.xlane.f32.xlu0 %v145
    %v204 = vpop.xlane.xlu0 %203
    %205 = vadd.xlane.f32.xlu0 %v146
    %v206 = vpop.xlane.xlu0 %205
    %207 = vadd.xlane.f32.xlu0 %v147
    %v208 = vpop.xlane.xlu0 %207
    %209 = vadd.xlane.f32.xlu0 %v148
    %v210 = vpop.xlane.xlu0 %209
    %211 = vadd.xlane.f32.xlu0 %v149
    %v212 = vpop.xlane.xlu0 %211
    %213 = vadd.xlane.f32.xlu0 %v150
    %v214 = vpop.xlane.xlu0 %213
    %v215 = vmax.f32 %v152, 1e-24
    %v216 = vmax.f32 %v154, 1e-24
    %v217 = vmax.f32 %v156, 1e-24
    %v218 = vmax.f32 %v158, 1e-24
    %v219 = vmax.f32 %v160, 1e-24
    %v220 = vmax.f32 %v162, 1e-24
    %v221 = vmax.f32 %v164, 1e-24
    %v222 = vmax.f32 %v166, 1e-24
    %v223 = vmax.f32 %v168, 1e-24
    %v224 = vmax.f32 %v170, 1e-24
    %v225 = vmax.f32 %v172, 1e-24
    %v226 = vmax.f32 %v174, 1e-24
    %v227 = vmax.f32 %v176, 1e-24
    %v228 = vmax.f32 %v178, 1e-24
    %v229 = vmax.f32 %v180, 1e-24
    %v230 = vmax.f32 %v182, 1e-24
    %v231 = vmax.f32 %v184, 1e-24
    %v232 = vmax.f32 %v186, 1e-24
    %v233 = vmax.f32 %v188, 1e-24
    %v234 = vmax.f32 %v190, 1e-24
    %v235 = vmax.f32 %v192, 1e-24
    %v236 = vmax.f32 %v194, 1e-24
    %v237 = vmax.f32 %v196, 1e-24
    %v238 = vmax.f32 %v198, 1e-24
    %v239 = vmax.f32 %v200, 1e-24
    %v240 = vmax.f32 %v202, 1e-24
    %v241 = vmax.f32 %v204, 1e-24
    %v242 = vmax.f32 %v206, 1e-24
    %v243 = vmax.f32 %v208, 1e-24
    %v244 = vmax.f32 %v210, 1e-24
    %v245 = vmax.f32 %v212, 1e-24
    %v246 = vmax.f32 %v214, 1e-24
    %v247 = vrsqrt.pop %v215
    %v248 = vrsqrt.pop %v216
    %v249 = vrsqrt.pop %v217
    %v250 = vrsqrt.pop %v218
    %v251 = vrsqrt.pop %v219
    %v252 = vrsqrt.pop %v220
    %v253 = vrsqrt.pop %v221
    %v254 = vrsqrt.pop %v222
    %v255 = vrsqrt.pop %v223
    %v256 = vrsqrt.pop %v224
    %v257 = vrsqrt.pop %v225
    %v258 = vrsqrt.pop %v226
    %v259 = vrsqrt.pop %v227
    %v260 = vrsqrt.pop %v228
    %v261 = vrsqrt.pop %v229
    %v262 = vrsqrt.pop %v230
    %v263 = vrsqrt.pop %v231
    %v264 = vrsqrt.pop %v232
    %v265 = vrsqrt.pop %v233
    %v266 = vrsqrt.pop %v234
    %v267 = vrsqrt.pop %v235
    %v268 = vrsqrt.pop %v236
    %v269 = vrsqrt.pop %v237
    %v270 = vrsqrt.pop %v238
    %v271 = vrsqrt.pop %v239
    %v272 = vrsqrt.pop %v240
    %v273 = vrsqrt.pop %v241
    %v274 = vrsqrt.pop %v242
    %v275 = vrsqrt.pop %v243
    %v276 = vrsqrt.pop %v244
    %v277 = vrsqrt.pop %v245
    %v278 = vrsqrt.pop %v246
    %v279 = vmul.f32 %v87, %v247
    %v280 = vmul.f32 %v88, %v248
    %v281 = vmul.f32 %v89, %v249
    %v282 = vmul.f32 %v90, %v250
    %v283 = vmul.f32 %v91, %v251
    %v284 = vmul.f32 %v92, %v252
    %v285 = vmul.f32 %v93, %v253
    %v286 = vmul.f32 %v94, %v254
    %v287 = vmul.f32 %v95, %v255
    %v288 = vmul.f32 %v96, %v256
    %v289 = vmul.f32 %v97, %v257
    %v290 = vmul.f32 %v98, %v258
    %v291 = vmul.f32 %v99, %v259
    %v292 = vmul.f32 %v100, %v260
    %v293 = vmul.f32 %v101, %v261
    %v294 = vmul.f32 %v102, %v262
    %v295 = vmul.f32 %v103, %v263
    %v296 = vmul.f32 %v104, %v264
    %v297 = vmul.f32 %v105, %v265
    %v298 = vmul.f32 %v106, %v266
    %v299 = vmul.f32 %v107, %v267
    %v300 = vmul.f32 %v108, %v268
    %v301 = vmul.f32 %v109, %v269
    %v302 = vmul.f32 %v110, %v270
    %v303 = vmul.f32 %v111, %v271
    %v304 = vmul.f32 %v112, %v272
    %v305 = vmul.f32 %v113, %v273
    %v306 = vmul.f32 %v114, %v274
    %v307 = vmul.f32 %v115, %v275
    %v308 = vmul.f32 %v116, %v276
    %v309 = vmul.f32 %v117, %v277
    %v310 = vmul.f32 %v118, %v278
    %v311 = vld [vmem:[%s2] sm:$0xf]
    %v312 = vmul.f32 %v311, %v311
    %vm313 = vcmask 1043456
    %v314 = vsel %vm313, %v312, 0.0
    %315 = vadd.xlane.f32.xlu0 %v314
    %v316 = vpop.xlane.xlu0 %315
    %v317 = vmax.f32 %v316, 1e-24
    %v318 = vrsqrt.pop %v317
    %v319 = vmul.f32 %v311, %v318
    %320 = vmatprep.subr.mxu0 0.0
    %321 = vmatpush1.xpose.msra.mxu0 %v279
    %322 = vmatprep.subr.mxu0 0.0
    %323 = vmatpush1.xpose.msra.mxu0 %v280
    %324 = vmatprep.subr.mxu0 0.0
    %325 = vmatpush1.xpose.msra.mxu0 %v281
    %326 = vmatprep.subr.mxu0 0.0
    %327 = vmatpush1.xpose.msra.mxu0 %v282
    %328 = vmatprep.subr.mxu0 0.0
    %329 = vmatpush1.xpose.msra.mxu0 %v283
    %330 = vmatprep.subr.mxu0 0.0
    %331 = vmatpush1.xpose.msra.mxu0 %v284
    %332 = vmatprep.subr.mxu0 0.0
    %333 = vmatpush1.xpose.msra.mxu0 %v285
    %334 = vmatprep.subr.mxu0 0.0
    %335 = vmatpush1.xpose.msra.mxu0 %v286
    %336 = vmatprep.subr.mxu0 0.0
    %337 = vmatpush1.xpose.msra.mxu0 %v287
    %338 = vmatprep.subr.mxu0 0.0
    %339 = vmatpush1.xpose.msra.mxu0 %v288
    %340 = vmatprep.subr.mxu0 0.0
    %341 = vmatpush1.xpose.msra.mxu0 %v289
    %342 = vmatprep.subr.mxu0 0.0
    %343 = vmatpush1.xpose.msra.mxu0 %v290
    %344 = vmatprep.subr.mxu0 0.0
    %345 = vmatpush1.xpose.msra.mxu0 %v291
    %346 = vmatprep.subr.mxu0 0.0
    %347 = vmatpush1.xpose.msra.mxu0 %v292
    %348 = vmatprep.subr.mxu0 0.0
    %349 = vmatpush1.xpose.msra.mxu0 %v293
    %350 = vmatprep.subr.mxu0 0.0
    %351 = vmatpush1.xpose.msra.mxu0 %v294
    %352 = vmatprep.subr.mxu0 0.0
    %353 = vmatpush1.xpose.msra.mxu0 %v295
    %354 = vmatprep.subr.mxu0 0.0
    %355 = vmatpush1.xpose.msra.mxu0 %v296
    %356 = vmatprep.subr.mxu0 0.0
    %357 = vmatpush1.xpose.msra.mxu0 %v297
    %358 = vmatprep.subr.mxu0 0.0
    %359 = vmatpush1.xpose.msra.mxu0 %v298
    %360 = vmatprep.subr.mxu0 0.0
    %361 = vmatpush1.xpose.msra.mxu0 %v299
    %362 = vmatprep.subr.mxu0 0.0
    %363 = vmatpush1.xpose.msra.mxu0 %v300
    %364 = vmatprep.subr.mxu0 0.0
    %365 = vmatpush1.xpose.msra.mxu0 %v301
    %366 = vmatprep.subr.mxu0 0.0
    %367 = vmatpush1.xpose.msra.mxu0 %v302
    %368 = vmatprep.subr.mxu0 0.0
    %369 = vmatpush1.xpose.msra.mxu0 %v303
    %370 = vmatprep.subr.mxu0 0.0
    %371 = vmatpush1.xpose.msra.mxu0 %v304
    %372 = vmatprep.subr.mxu0 0.0
    %373 = vmatpush1.xpose.msra.mxu0 %v305
    %374 = vmatprep.subr.mxu0 0.0
    %375 = vmatpush1.xpose.msra.mxu0 %v306
    %376 = vmatprep.subr.mxu0 0.0
    %377 = vmatpush1.xpose.msra.mxu0 %v307
    %378 = vmatprep.subr.mxu0 0.0
    %379 = vmatpush1.xpose.msra.mxu0 %v308
    %380 = vmatprep.subr.mxu0 0.0
    %381 = vmatpush1.xpose.msra.mxu0 %v309
    %382 = vmatprep.subr.mxu0 0.0
    %383 = vmatpush1.xpose.msra.mxu0 %v310
    %384 = vmatprep.mubr.f32.mxu0 0.0
    %385 = vmatmul.mubr.f32.gmra.mrb[0].mxu0 %v319
    %v386 = vpop.f32.mrb[0].mxu0
    %v387 = vadd.f32 0.0, %v386
    %v388 = vpop.f32.mrb[0].mxu0
    %v389 = vadd.f32 0.0, %v388
    %390 = vdwg.mxu0
    %v391 = vmul.f32 %v387, 10.0
    %v392 = vmul.f32 %v389, 10.0
    %v393 = vsel %vm313, %v391, -inf
    %v394 = vrot.slane %v393, 4
    %v395 = vmax.f32 %v393, %v394
    %v396 = vrot.slane %v395, 2
    %v397 = vmax.f32 %v395, %v396
    %v398 = vrot.slane %v397, 1
    %v399 = vmax.f32 %v397, %v398
    %v400 = vsel %vm313, %v392, -inf
    %v401 = vrot.slane %v400, 4
    %v402 = vmax.f32 %v400, %v401
    %v403 = vrot.slane %v402, 2
    %v404 = vmax.f32 %v402, %v403
    %v405 = vrot.slane %v404, 1
    %v406 = vmax.f32 %v404, %v405
    %v407 = vsub.f32 %v391, %v399
    %v408 = vsub.f32 %v392, %v406
    %v409 = vmul.f32 %v407, 1.442695
    %v410 = vpow.pop %v409
    %v411 = vmul.f32 %v408, 1.442695
    %v412 = vpow.pop %v411
    %v413 = vsel %vm313, %v410, 0.0
    %v414 = vrot.slane %v413, 4
    %v415 = vadd.f32 %v413, %v414
    %v416 = vrot.slane %v415, 2
    %v417 = vadd.f32 %v415, %v416
    %v418 = vrot.slane %v417, 1
    %v419 = vadd.f32 %v417, %v418
    %v420 = vsel %vm313, %v412, 0.0
    %v421 = vrot.slane %v420, 4
    %v422 = vadd.f32 %v420, %v421
    %v423 = vrot.slane %v422, 2
    %v424 = vadd.f32 %v422, %v423
    %v425 = vrot.slane %v424, 1
    %v426 = vadd.f32 %v424, %v425
    %v427 = vrcp.pop %v419
    %v428 = vrcp.pop %v426
    %v429 = vmul.f32 %v410, %v427
    %v430 = vmul.f32 %v412, %v428
    %v431 = vlaneseq
    %v432 = vshrl.u32 %v431, 7
    %v433 = vsub.s32 0, %v432
    %v434 = vrot.slane %v429, %v433
    %v435 = vlaneseq
    %v436 = vshrl.u32 %v435, 7
    %v437 = vsub.s32 0, %v436
    %v438 = vrot.slane %v430, %v437
    %v439 = vmul.f32 %v85, %v434
    %v440 = vmul.f32 %v86, %v438
    %441 = vst [vmem:[#allocation2] sm:$0xff] %v439
    %442 = vst [vmem:[#allocation2 + $0x8] sm:$0xff] %v440
    %v443 = vlaneseq
    %v444 = vshrl.u32 %v443, 7
    %v445 = vsub.s32 1, %v444
    %v446 = vrot.slane %v429, %v445
    %v447 = vlaneseq
    %v448 = vshrl.u32 %v447, 7
    %v449 = vsub.s32 1, %v448
    %v450 = vrot.slane %v430, %v449
    %v451 = vmul.f32 %v85, %v446
    %v452 = vmul.f32 %v86, %v450
    %453 = vst [vmem:[#allocation2 + $0x10] sm:$0xff] %v451
    %454 = vst [vmem:[#allocation2 + $0x18] sm:$0xff] %v452
    %v455 = vlaneseq
    %v456 = vshrl.u32 %v455, 7
    %v457 = vsub.s32 2, %v456
    %v458 = vrot.slane %v429, %v457
    %v459 = vlaneseq
    %v460 = vshrl.u32 %v459, 7
    %v461 = vsub.s32 2, %v460
    %v462 = vrot.slane %v430, %v461
    %v463 = vmul.f32 %v85, %v458
    %v464 = vmul.f32 %v86, %v462
    %465 = vst [vmem:[#allocation2 + $0x20] sm:$0xff] %v463
    %466 = vst [vmem:[#allocation2 + $0x28] sm:$0xff] %v464
    %v467 = vlaneseq
    %v468 = vshrl.u32 %v467, 7
    %v469 = vsub.s32 3, %v468
    %v470 = vrot.slane %v429, %v469
    %v471 = vlaneseq
    %v472 = vshrl.u32 %v471, 7
    %v473 = vsub.s32 3, %v472
    %v474 = vrot.slane %v430, %v473
    %v475 = vmul.f32 %v85, %v470
    %v476 = vmul.f32 %v86, %v474
    %477 = vst [vmem:[#allocation2 + $0x30] sm:$0xff] %v475
    %478 = vst [vmem:[#allocation2 + $0x38] sm:$0xff] %v476
    %v479 = vld [vmem:[#allocation2] sm:$0xff]
    %v480 = vld [vmem:[#allocation2 + $0x8] sm:$0xff]
    %v481 = vld [vmem:[#allocation2 + $0x10] sm:$0xff]
    %v482 = vld [vmem:[#allocation2 + $0x18] sm:$0xff]
    %v483 = vld [vmem:[#allocation2 + $0x20] sm:$0xff]
    %v484 = vld [vmem:[#allocation2 + $0x28] sm:$0xff]
    %v485 = vld [vmem:[#allocation2 + $0x30] sm:$0xff]
    %v486 = vld [vmem:[#allocation2 + $0x38] sm:$0xff]
    %v487 = vmul.f32 %v479, %v479
    %v488 = vmul.f32 %v480, %v480
    %v489 = vmul.f32 %v481, %v481
    %v490 = vmul.f32 %v482, %v482
    %v491 = vmul.f32 %v483, %v483
    %v492 = vmul.f32 %v484, %v484
    %v493 = vmul.f32 %v485, %v485
    %v494 = vmul.f32 %v486, %v486
    %v495 = vadd.f32 %v487, %v488
    %496 = vadd.xlane.f32.xlu0 %v495
    %v497 = vpop.xlane.xlu0 %496
    %v498 = vadd.f32 %v489, %v490
    %499 = vadd.xlane.f32.xlu0 %v498
    %v500 = vpop.xlane.xlu0 %499
    %v501 = vadd.f32 %v491, %v492
    %502 = vadd.xlane.f32.xlu0 %v501
    %v503 = vpop.xlane.xlu0 %502
    %v504 = vadd.f32 %v493, %v494
    %505 = vadd.xlane.f32.xlu0 %v504
    %v506 = vpop.xlane.xlu0 %505
    %v507 = vmax.f32 %v497, 1e-24
    %v508 = vmax.f32 %v500, 1e-24
    %v509 = vmax.f32 %v503, 1e-24
    %v510 = vmax.f32 %v506, 1e-24
    %v511 = vrsqrt.pop %v507
    %v512 = vrsqrt.pop %v508
    %v513 = vrsqrt.pop %v509
    %v514 = vrsqrt.pop %v510
    %v515 = vmul.f32 %v479, %v511
    %v516 = vmul.f32 %v480, %v511
    %v517 = vmul.f32 %v481, %v512
    %v518 = vmul.f32 %v482, %v512
    %v519 = vmul.f32 %v483, %v513
    %v520 = vmul.f32 %v484, %v513
    %v521 = vmul.f32 %v485, %v514
    %v522 = vmul.f32 %v486, %v514
    %v523 = vld [vmem:[#allocation9] sm:$0xff]
    %v524 = vld [vmem:[#allocation9 + $0x8] sm:$0xff]
    %v525 = vld [vmem:[#allocation9 + $0x10] sm:$0xff]
    %v526 = vld [vmem:[#allocation9 + $0x18] sm:$0xff]
    %v527 = vld [vmem:[#allocation9 + $0x20] sm:$0xff]
    %v528 = vld [vmem:[#allocation9 + $0x28] sm:$0xff]
    %v529 = vld [vmem:[#allocation9 + $0x30] sm:$0xff]
    %v530 = vld [vmem:[#allocation9 + $0x38] sm:$0xff]
    %v531 = vld [vmem:[#allocation9 + $0x40] sm:$0xff]
    %v532 = vld [vmem:[#allocation9 + $0x48] sm:$0xff]
    %v533 = vld [vmem:[#allocation9 + $0x50] sm:$0xff]
    %v534 = vld [vmem:[#allocation9 + $0x58] sm:$0xff]
    %v535 = vld [vmem:[#allocation9 + $0x60] sm:$0xff]
    %v536 = vld [vmem:[#allocation9 + $0x68] sm:$0xff]
    %v537 = vld [vmem:[#allocation9 + $0x70] sm:$0xff]
    %v538 = vld [vmem:[#allocation9 + $0x78] sm:$0xff]
    %v539 = vld [vmem:[#allocation9 + $0x80] sm:$0xff]
    %v540 = vld [vmem:[#allocation9 + $0x88] sm:$0xff]
    %v541 = vld [vmem:[#allocation9 + $0x90] sm:$0xff]
    %v542 = vld [vmem:[#allocation9 + $0x98] sm:$0xff]
    %v543 = vld [vmem:[#allocation9 + $0xa0] sm:$0xff]
    %v544 = vld [vmem:[#allocation9 + $0xa8] sm:$0xff]
    %v545 = vld [vmem:[#allocation9 + $0xb0] sm:$0xff]
    %v546 = vld [vmem:[#allocation9 + $0xb8] sm:$0xff]
    %v547 = vld [vmem:[#allocation9 + $0xc0] sm:$0xff]
    %v548 = vld [vmem:[#allocation9 + $0xc8] sm:$0xff]
    %v549 = vld [vmem:[#allocation9 + $0xd0] sm:$0xff]
    %v550 = vld [vmem:[#allocation9 + $0xd8] sm:$0xff]
    %v551 = vld [vmem:[#allocation9 + $0xe0] sm:$0xff]
    %v552 = vld [vmem:[#allocation9 + $0xe8] sm:$0xff]
    %v553 = vld [vmem:[#allocation9 + $0xf0] sm:$0xff]
    %v554 = vld [vmem:[#allocation9 + $0xf8] sm:$0xff]
    %v555 = vld [vmem:[%s4] sm:$0x1]
    %v557 = vlaneseq
    %v558 = vshrl.u32 %v557, 7
    %v559 = vsub.s32 0, %v558
    %v560 = vrot.slane %v555, %v559
    %562 = vmatprep.subr.mxu0 0.0
    %563 = vmatpush1.msra.mxu0 %v523
    %564 = vmatprep.subr.mxu0 0.0
    %565 = vmatpush1.msra.mxu0 %v524
    %566 = vmatprep.subr.mxu0 0.0
    %567 = vmatpush1.msra.mxu0 %v525
    %568 = vmatprep.subr.mxu0 0.0
    %569 = vmatpush1.msra.mxu0 %v526
    %570 = vmatprep.subr.mxu0 0.0
    %571 = vmatpush1.msra.mxu0 %v527
    %572 = vmatprep.subr.mxu0 0.0
    %573 = vmatpush1.msra.mxu0 %v528
    %574 = vmatprep.subr.mxu0 0.0
    %575 = vmatpush1.msra.mxu0 %v529
    %576 = vmatprep.subr.mxu0 0.0
    %577 = vmatpush1.msra.mxu0 %v530
    %578 = vmatprep.subr.mxu0 0.0
    %579 = vmatpush1.msra.mxu0 %v531
    %580 = vmatprep.subr.mxu0 0.0
    %581 = vmatpush1.msra.mxu0 %v532
    %582 = vmatprep.subr.mxu0 0.0
    %583 = vmatpush1.msra.mxu0 %v533
    %584 = vmatprep.subr.mxu0 0.0
    %585 = vmatpush1.msra.mxu0 %v534
    %586 = vmatprep.subr.mxu0 0.0
    %587 = vmatpush1.msra.mxu0 %v535
    %588 = vmatprep.subr.mxu0 0.0
    %589 = vmatpush1.msra.mxu0 %v536
    %590 = vmatprep.subr.mxu0 0.0
    %591 = vmatpush1.msra.mxu0 %v537
    %592 = vmatprep.subr.mxu0 0.0
    %593 = vmatpush1.msra.mxu0 %v538
    %594 = vmatprep.subr.mxu0 0.0
    %595 = vmatpush1.msra.mxu0 %v539
    %596 = vmatprep.subr.mxu0 0.0
    %597 = vmatpush1.msra.mxu0 %v540
    %598 = vmatprep.subr.mxu0 0.0
    %599 = vmatpush1.msra.mxu0 %v541
    %600 = vmatprep.subr.mxu0 0.0
    %601 = vmatpush1.msra.mxu0 %v542
    %602 = vmatprep.subr.mxu0 0.0
    %603 = vmatpush1.msra.mxu0 %v543
    %604 = vmatprep.subr.mxu0 0.0
    %605 = vmatpush1.msra.mxu0 %v544
    %606 = vmatprep.subr.mxu0 0.0
    %607 = vmatpush1.msra.mxu0 %v545
    %608 = vmatprep.subr.mxu0 0.0
    %609 = vmatpush1.msra.mxu0 %v546
    %610 = vmatprep.subr.mxu0 0.0
    %611 = vmatpush1.msra.mxu0 %v547
    %612 = vmatprep.subr.mxu0 0.0
    %613 = vmatpush1.msra.mxu0 %v548
    %614 = vmatprep.subr.mxu0 0.0
    %615 = vmatpush1.msra.mxu0 %v549
    %616 = vmatprep.subr.mxu0 0.0
    %617 = vmatpush1.msra.mxu0 %v550
    %618 = vmatprep.subr.mxu0 0.0
    %619 = vmatpush1.msra.mxu0 %v551
    %620 = vmatprep.subr.mxu0 0.0
    %621 = vmatpush1.msra.mxu0 %v552
    %622 = vmatprep.subr.mxu0 0.0
    %623 = vmatpush1.msra.mxu0 %v553
    %624 = vmatprep.subr.mxu0 0.0
    %625 = vmatpush1.msra.mxu0 %v554
    %626 = vmatprep.mubr.f32.mxu0 %v516
    %627 = vmatmul.mubr.f32.gmra.mrb[0].mxu0 %v515
    %v628 = vpop.f32.mrb[0].mxu0
    %v629 = vadd.f32 %v560, %v628
    %v630 = vpop.f32.mrb[0].mxu0
    %631 = vmatprep.mubr.f32.mxu0 %v518
    %632 = vmatmul.mubr.f32.gmra.mrb[0].mxu0 %v517
    %v633 = vpop.f32.mrb[0].mxu0
    %v634 = vadd.f32 %v560, %v633
    %v635 = vpop.f32.mrb[0].mxu0
    %636 = vmatprep.mubr.f32.mxu0 %v520
    %637 = vmatmul.mubr.f32.gmra.mrb[0].mxu0 %v519
    %v638 = vpop.f32.mrb[0].mxu0
    %v639 = vadd.f32 %v560, %v638
    %v640 = vpop.f32.mrb[0].mxu0
    %641 = vmatprep.mubr.f32.mxu0 %v522
    %642 = vmatmul.mubr.f32.gmra.mrb[0].mxu0 %v521
    %v643 = vpop.f32.mrb[0].mxu0
    %v644 = vadd.f32 %v560, %v643
    %v645 = vpop.f32.mrb[0].mxu0
    %646 = vdwg.mxu0
    %v647 = vtanh.pop %v629
    %v648 = vtanh.pop %v634
    %v649 = vtanh.pop %v639
    %v650 = vtanh.pop %v644
    %v651 = vld [vmem:[#allocation10] sm:$0xff]
    %v652 = vld [vmem:[#allocation10 + $0x8] sm:$0xff]
    %v653 = vld [vmem:[#allocation10 + $0x10] sm:$0xff]
    %v654 = vld [vmem:[#allocation10 + $0x18] sm:$0xff]
    %v655 = vld [vmem:[#allocation10 + $0x20] sm:$0xff]
    %v656 = vld [vmem:[#allocation10 + $0x28] sm:$0xff]
    %v657 = vld [vmem:[#allocation10 + $0x30] sm:$0xff]
    %v658 = vld [vmem:[#allocation10 + $0x38] sm:$0xff]
    %v659 = vld [vmem:[#allocation10 + $0x40] sm:$0xff]
    %v660 = vld [vmem:[#allocation10 + $0x48] sm:$0xff]
    %v661 = vld [vmem:[#allocation10 + $0x50] sm:$0xff]
    %v662 = vld [vmem:[#allocation10 + $0x58] sm:$0xff]
    %v663 = vld [vmem:[#allocation10 + $0x60] sm:$0xff]
    %v664 = vld [vmem:[#allocation10 + $0x68] sm:$0xff]
    %v665 = vld [vmem:[#allocation10 + $0x70] sm:$0xff]
    %v666 = vld [vmem:[#allocation10 + $0x78] sm:$0xff]
    %v667 = vld [vmem:[#allocation10 + $0x80] sm:$0xff]
    %v668 = vld [vmem:[#allocation10 + $0x88] sm:$0xff]
    %v669 = vld [vmem:[#allocation10 + $0x90] sm:$0xff]
    %v670 = vld [vmem:[#allocation10 + $0x98] sm:$0xff]
    %v671 = vld [vmem:[#allocation10 + $0xa0] sm:$0xff]
    %v672 = vld [vmem:[#allocation10 + $0xa8] sm:$0xff]
    %v673 = vld [vmem:[#allocation10 + $0xb0] sm:$0xff]
    %v674 = vld [vmem:[#allocation10 + $0xb8] sm:$0xff]
    %v675 = vld [vmem:[#allocation10 + $0xc0] sm:$0xff]
    %v676 = vld [vmem:[#allocation10 + $0xc8] sm:$0xff]
    %v677 = vld [vmem:[#allocation10 + $0xd0] sm:$0xff]
    %v678 = vld [vmem:[#allocation10 + $0xd8] sm:$0xff]
    %v679 = vld [vmem:[#allocation10 + $0xe0] sm:$0xff]
    %v680 = vld [vmem:[#allocation10 + $0xe8] sm:$0xff]
    %v681 = vld [vmem:[#allocation10 + $0xf0] sm:$0xff]
    %v682 = vld [vmem:[#allocation10 + $0xf8] sm:$0xff]
    %v683 = vld [vmem:[%s6] sm:$0x3]
    %v685 = vlaneseq
    %v686 = vshrl.u32 %v685, 7
    %v687 = vsub.s32 0, %v686
    %v688 = vrot.slane %v683, %v687
    %v689 = vlaneseq
    %v690 = vshrl.u32 %v689, 7
    %v691 = vsub.s32 1, %v690
    %v692 = vrot.slane %v683, %v691
    %695 = vmatprep.subr.mxu0 %v652
    %696 = vmatpush1.msra.mxu0 %v651
    %697 = vmatprep.subr.mxu0 %v654
    %698 = vmatpush1.msra.mxu0 %v653
    %699 = vmatprep.subr.mxu0 %v656
    %700 = vmatpush1.msra.mxu0 %v655
    %701 = vmatprep.subr.mxu0 %v658
    %702 = vmatpush1.msra.mxu0 %v657
    %703 = vmatprep.subr.mxu0 %v660
    %704 = vmatpush1.msra.mxu0 %v659
    %705 = vmatprep.subr.mxu0 %v662
    %706 = vmatpush1.msra.mxu0 %v661
    %707 = vmatprep.subr.mxu0 %v664
    %708 = vmatpush1.msra.mxu0 %v663
    %709 = vmatprep.subr.mxu0 %v666
    %710 = vmatpush1.msra.mxu0 %v665
    %711 = vmatprep.subr.mxu0 %v668
    %712 = vmatpush1.msra.mxu0 %v667
    %713 = vmatprep.subr.mxu0 %v670
    %714 = vmatpush1.msra.mxu0 %v669
    %715 = vmatprep.subr.mxu0 %v672
    %716 = vmatpush1.msra.mxu0 %v671
    %717 = vmatprep.subr.mxu0 %v674
    %718 = vmatpush1.msra.mxu0 %v673
    %719 = vmatprep.subr.mxu0 %v676
    %720 = vmatpush1.msra.mxu0 %v675
    %721 = vmatprep.subr.mxu0 %v678
    %722 = vmatpush1.msra.mxu0 %v677
    %723 = vmatprep.subr.mxu0 %v680
    %724 = vmatpush1.msra.mxu0 %v679
    %725 = vmatprep.subr.mxu0 %v682
    %726 = vmatpush1.msra.mxu0 %v681
    %727 = vmatprep.subr.mxu0 0.0
    %728 = vmatpush1.msra.mxu0 0.0
    %729 = vmatprep.subr.mxu0 0.0
    %730 = vmatpush1.msra.mxu0 0.0
    %731 = vmatprep.subr.mxu0 0.0
    %732 = vmatpush1.msra.mxu0 0.0
    %733 = vmatprep.subr.mxu0 0.0
    %734 = vmatpush1.msra.mxu0 0.0
    %735 = vmatprep.subr.mxu0 0.0
    %736 = vmatpush1.msra.mxu0 0.0
    %737 = vmatprep.subr.mxu0 0.0
    %738 = vmatpush1.msra.mxu0 0.0
    %739 = vmatprep.subr.mxu0 0.0
    %740 = vmatpush1.msra.mxu0 0.0
    %741 = vmatprep.subr.mxu0 0.0
    %742 = vmatpush1.msra.mxu0 0.0
    %743 = vmatprep.subr.mxu0 0.0
    %744 = vmatpush1.msra.mxu0 0.0
    %745 = vmatprep.subr.mxu0 0.0
    %746 = vmatpush1.msra.mxu0 0.0
    %747 = vmatprep.subr.mxu0 0.0
    %748 = vmatpush1.msra.mxu0 0.0
    %749 = vmatprep.subr.mxu0 0.0
    %750 = vmatpush1.msra.mxu0 0.0
    %751 = vmatprep.subr.mxu0 0.0
    %752 = vmatpush1.msra.mxu0 0.0
    %753 = vmatprep.subr.mxu0 0.0
    %754 = vmatpush1.msra.mxu0 0.0
    %755 = vmatprep.subr.mxu0 0.0
    %756 = vmatpush1.msra.mxu0 0.0
    %757 = vmatprep.subr.mxu0 0.0
    %758 = vmatpush1.msra.mxu0 0.0
    %759 = vmatprep.mubr.f32.mxu0 0.0
    %760 = vmatmul.mubr.f32.gmra.mrb[0].mxu0 %v647
    %v761 = vpop.f32.mrb[0].mxu0
    %v762 = vadd.f32 %v688, %v761
    %v763 = vpop.f32.mrb[0].mxu0
    %v764 = vadd.f32 %v692, %v763
    %765 = vmatprep.mubr.f32.mxu0 0.0
    %766 = vmatmul.mubr.f32.gmra.mrb[0].mxu0 %v648
    %v767 = vpop.f32.mrb[0].mxu0
    %v768 = vadd.f32 %v688, %v767
    %v769 = vpop.f32.mrb[0].mxu0
    %v770 = vadd.f32 %v692, %v769
    %771 = vmatprep.mubr.f32.mxu0 0.0
    %772 = vmatmul.mubr.f32.gmra.mrb[0].mxu0 %v649
    %v773 = vpop.f32.mrb[0].mxu0
    %v774 = vadd.f32 %v688, %v773
    %v775 = vpop.f32.mrb[0].mxu0
    %v776 = vadd.f32 %v692, %v775
    %777 = vmatprep.mubr.f32.mxu0 0.0
    %778 = vmatmul.mubr.f32.gmra.mrb[0].mxu0 %v650
    %v779 = vpop.f32.mrb[0].mxu0
    %v780 = vadd.f32 %v688, %v779
    %v781 = vpop.f32.mrb[0].mxu0
    %v782 = vadd.f32 %v692, %v781
    %783 = vdwg.mxu0
    %v784 = vmul.f32 %v762, %v762
    %v785 = vmul.f32 %v768, %v768
    %v786 = vmul.f32 %v774, %v774
    %v787 = vmul.f32 %v780, %v780
    %788 = vadd.xlane.f32.xlu0 %v784
    %v789 = vpop.xlane.xlu0 %788
    %790 = vadd.xlane.f32.xlu0 %v785
    %v791 = vpop.xlane.xlu0 %790
    %792 = vadd.xlane.f32.xlu0 %v786
    %v793 = vpop.xlane.xlu0 %792
    %794 = vadd.xlane.f32.xlu0 %v787
    %v795 = vpop.xlane.xlu0 %794
    %v796 = vmax.f32 %v789, 1e-24
    %v797 = vmax.f32 %v791, 1e-24
    %v798 = vmax.f32 %v793, 1e-24
    %v799 = vmax.f32 %v795, 1e-24
    %v800 = vrsqrt.pop %v796
    %v801 = vrsqrt.pop %v797
    %v802 = vrsqrt.pop %v798
    %v803 = vrsqrt.pop %v799
    %v804 = vmul.f32 %v762, %v800
    %v805 = vmul.f32 %v768, %v801
    %v806 = vmul.f32 %v774, %v802
    %v807 = vmul.f32 %v780, %v803
    %v808 = vsub.f32 0.0, %v764
    %v809 = vsub.f32 0.0, %v770
    %v810 = vsub.f32 0.0, %v776
    %v811 = vsub.f32 0.0, %v782
    %v812 = vmul.f32 %v808, 1.442695
    %v813 = vpow.pop %v812
    %v814 = vmul.f32 %v809, 1.442695
    %v815 = vpow.pop %v814
    %v816 = vmul.f32 %v810, 1.442695
    %v817 = vpow.pop %v816
    %v818 = vmul.f32 %v811, 1.442695
    %v819 = vpow.pop %v818
    %v820 = vsub.f32 %v813, %v808
    %v821 = vsub.f32 %v815, %v809
    %v822 = vsub.f32 %v817, %v810
    %v823 = vsub.f32 %v819, %v811
    %v824 = vsub.f32 %v820, 1.0
    %v825 = vsub.f32 %v821, 1.0
    %v826 = vsub.f32 %v822, 1.0
    %v827 = vsub.f32 %v823, 1.0
    %v828 = vadd.f32 %v824, %v825
    %v829 = vadd.f32 %v828, %v826
    %v830 = vadd.f32 %v829, %v827
    %831 = vadd.xlane.f32.xlu0 %v830
    %v832 = vpop.xlane.xlu0 %831
    %v833 = vrot.slane %v832, 4
    %v834 = vadd.f32 %v832, %v833
    %v835 = vrot.slane %v834, 2
    %v836 = vadd.f32 %v834, %v835
    %v837 = vrot.slane %v836, 1
    %v838 = vadd.f32 %v836, %v837
    %s839 = vtos %v838
    %s840 = smul.f32 %s839, 0.0625
    %841 = vmatprep.subr.mxu0 0.0
    %842 = vmatpush1.xpose.msra.mxu0 %v279
    %843 = vmatprep.subr.mxu0 0.0
    %844 = vmatpush1.xpose.msra.mxu0 %v280
    %845 = vmatprep.subr.mxu0 0.0
    %846 = vmatpush1.xpose.msra.mxu0 %v281
    %847 = vmatprep.subr.mxu0 0.0
    %848 = vmatpush1.xpose.msra.mxu0 %v282
    %849 = vmatprep.subr.mxu0 0.0
    %850 = vmatpush1.xpose.msra.mxu0 %v283
    %851 = vmatprep.subr.mxu0 0.0
    %852 = vmatpush1.xpose.msra.mxu0 %v284
    %853 = vmatprep.subr.mxu0 0.0
    %854 = vmatpush1.xpose.msra.mxu0 %v285
    %855 = vmatprep.subr.mxu0 0.0
    %856 = vmatpush1.xpose.msra.mxu0 %v286
    %857 = vmatprep.subr.mxu0 0.0
    %858 = vmatpush1.xpose.msra.mxu0 %v287
    %859 = vmatprep.subr.mxu0 0.0
    %860 = vmatpush1.xpose.msra.mxu0 %v288
    %861 = vmatprep.subr.mxu0 0.0
    %862 = vmatpush1.xpose.msra.mxu0 %v289
    %863 = vmatprep.subr.mxu0 0.0
    %864 = vmatpush1.xpose.msra.mxu0 %v290
    %865 = vmatprep.subr.mxu0 0.0
    %866 = vmatpush1.xpose.msra.mxu0 %v291
    %867 = vmatprep.subr.mxu0 0.0
    %868 = vmatpush1.xpose.msra.mxu0 %v292
    %869 = vmatprep.subr.mxu0 0.0
    %870 = vmatpush1.xpose.msra.mxu0 %v293
    %871 = vmatprep.subr.mxu0 0.0
    %872 = vmatpush1.xpose.msra.mxu0 %v294
    %873 = vmatprep.subr.mxu0 0.0
    %874 = vmatpush1.xpose.msra.mxu0 %v295
    %875 = vmatprep.subr.mxu0 0.0
    %876 = vmatpush1.xpose.msra.mxu0 %v296
    %877 = vmatprep.subr.mxu0 0.0
    %878 = vmatpush1.xpose.msra.mxu0 %v297
    %879 = vmatprep.subr.mxu0 0.0
    %880 = vmatpush1.xpose.msra.mxu0 %v298
    %881 = vmatprep.subr.mxu0 0.0
    %882 = vmatpush1.xpose.msra.mxu0 %v299
    %883 = vmatprep.subr.mxu0 0.0
    %884 = vmatpush1.xpose.msra.mxu0 %v300
    %885 = vmatprep.subr.mxu0 0.0
    %886 = vmatpush1.xpose.msra.mxu0 %v301
    %887 = vmatprep.subr.mxu0 0.0
    %888 = vmatpush1.xpose.msra.mxu0 %v302
    %889 = vmatprep.subr.mxu0 0.0
    %890 = vmatpush1.xpose.msra.mxu0 %v303
    %891 = vmatprep.subr.mxu0 0.0
    %892 = vmatpush1.xpose.msra.mxu0 %v304
    %893 = vmatprep.subr.mxu0 0.0
    %894 = vmatpush1.xpose.msra.mxu0 %v305
    %895 = vmatprep.subr.mxu0 0.0
    %896 = vmatpush1.xpose.msra.mxu0 %v306
    %897 = vmatprep.subr.mxu0 0.0
    %898 = vmatpush1.xpose.msra.mxu0 %v307
    %899 = vmatprep.subr.mxu0 0.0
    %900 = vmatpush1.xpose.msra.mxu0 %v308
    %901 = vmatprep.subr.mxu0 0.0
    %902 = vmatpush1.xpose.msra.mxu0 %v309
    %903 = vmatprep.subr.mxu0 0.0
    %904 = vmatpush1.xpose.msra.mxu0 %v310
    %905 = vmatprep.mubr.f32.mxu0 0.0
    %906 = vmatmul.mubr.f32.gmra.mrb[0].mxu0 %v804
    %v907 = vpop.f32.mrb[0].mxu0
    %v908 = vadd.f32 0.0, %v907
    %v909 = vpop.f32.mrb[0].mxu0
    %v910 = vadd.f32 0.0, %v909
    %911 = vmatprep.mubr.f32.mxu0 0.0
    %912 = vmatmul.mubr.f32.gmra.mrb[0].mxu0 %v805
    %v913 = vpop.f32.mrb[0].mxu0
    %v914 = vadd.f32 0.0, %v913
    %v915 = vpop.f32.mrb[0].mxu0
    %v916 = vadd.f32 0.0, %v915
    %917 = vmatprep.mubr.f32.mxu0 0.0
    %918 = vmatmul.mubr.f32.gmra.mrb[0].mxu0 %v806
    %v919 = vpop.f32.mrb[0].mxu0
    %v920 = vadd.f32 0.0, %v919
    %v921 = vpop.f32.mrb[0].mxu0
    %v922 = vadd.f32 0.0, %v921
    %923 = vmatprep.mubr.f32.mxu0 0.0
    %924 = vmatmul.mubr.f32.gmra.mrb[0].mxu0 %v807
    %v925 = vpop.f32.mrb[0].mxu0
    %v926 = vadd.f32 0.0, %v925
    %v927 = vpop.f32.mrb[0].mxu0
    %v928 = vadd.f32 0.0, %v927
    %929 = vdwg.mxu0
    %v930 = vmul.f32 %v908, 10.0
    %v931 = vmul.f32 %v910, 10.0
    %v932 = vmul.f32 %v914, 10.0
    %v933 = vmul.f32 %v916, 10.0
    %v934 = vmul.f32 %v920, 10.0
    %v935 = vmul.f32 %v922, 10.0
    %v936 = vmul.f32 %v926, 10.0
    %v937 = vmul.f32 %v928, 10.0
    %v938 = vmul.f32 %v930, 1.442695
    %v939 = vpow.pop %v938
    %v940 = vmul.f32 %v931, 1.442695
    %v941 = vpow.pop %v940
    %v942 = vmul.f32 %v939, %v434
    %v943 = vmul.f32 %v941, %v438
    %v944 = vmul.f32 %v932, 1.442695
    %v945 = vpow.pop %v944
    %v946 = vmul.f32 %v933, 1.442695
    %v947 = vpow.pop %v946
    %v948 = vmul.f32 %v945, %v446
    %v949 = vmul.f32 %v947, %v450
    %v950 = vadd.f32 %v942, %v948
    %v951 = vadd.f32 %v943, %v949
    %v952 = vmul.f32 %v934, 1.442695
    %v953 = vpow.pop %v952
    %v954 = vmul.f32 %v935, 1.442695
    %v955 = vpow.pop %v954
    %v956 = vmul.f32 %v953, %v458
    %v957 = vmul.f32 %v955, %v462
    %v958 = vadd.f32 %v950, %v956
    %v959 = vadd.f32 %v951, %v957
    %v960 = vmul.f32 %v936, 1.442695
    %v961 = vpow.pop %v960
    %v962 = vmul.f32 %v937, 1.442695
    %v963 = vpow.pop %v962
    %v964 = vmul.f32 %v961, %v470
    %v965 = vmul.f32 %v963, %v474
    %v966 = vadd.f32 %v958, %v964
    %v967 = vadd.f32 %v959, %v965
    %v968 = vlog2.pop %v966
    %v969 = vmul.f32 %v968, 0.6931472
    %v970 = vlog2.pop %v967
    %v971 = vmul.f32 %v970, 0.6931472
    %v972 = vadd.f32 %v966, %v967
    %973 = vadd.xlane.f32.xlu0 %v972
    %v974 = vpop.xlane.xlu0 %973
    %v975 = vlog2.pop %v974
    %v976 = vmul.f32 %v975, 0.6931472
    %v977 = vsub.f32 %v969, %v976
    %v978 = vsub.f32 %v971, %v976
    %979 = vst [vmem:[#allocation12] sm:$0xff] %v977
    %980 = vst [vmem:[#allocation12 + $0x8] sm:$0xff] %v978
    %v981 = vmul.f32 %v977, %v85
    %v982 = vmul.f32 %v978, %v86
    %v983 = vadd.f32 %v981, %v982
    %984 = vadd.xlane.f32.xlu0 %v983
    %v985 = vpop.xlane.xlu0 %984
    %v986 = vrot.slane %v985, 4
    %v987 = vadd.f32 %v985, %v986
    %v988 = vrot.slane %v987, 2
    %v989 = vadd.f32 %v987, %v988
    %v990 = vrot.slane %v989, 1
    %v991 = vadd.f32 %v989, %v990
    %s992 = vtos %v991
    %s993 = smul.f32 %s992, -0.125
    %s994 = scalar_lea.smem [#allocation13], 0
    %995 = sst [smem:[%s994]] %s993
    %s996 = scalar_lea.smem [#allocation14], 0
    %997 = sst [smem:[%s996]] %s840
    // Predicated region
    $region46: #{tpu_custom_call.1} parent=1 // pred_check
      _
    $region47: #{tpu_custom_call.1} parent=1 // pred_check_branch
      %999 = sbr.rel (0) target = $region49
    $region48: #{tpu_custom_call.1} parent=1 // pred_region
      %s1001 = ssub.s32 256, 256
      %1002 = vsyncadd [#allocation5], %s1001
      %s1004 = sshll.u32 [#allocation12], 4
      %s1005 = int_to_ptr.vmem [resolvable:$true] %s1004
      %1007 = dma.vmem_to_hbm [thread:$0]  %s1005, 256, %s7, [#allocation5]
    $region49: #{tpu_custom_call.1} parent=1 // pred_fallthru
      _
    // Predicated region
    $region50: #{tpu_custom_call.1} parent=1 // pred_check
      _
    $region51: #{tpu_custom_call.1} parent=1 // pred_check_branch
      %1009 = sbr.rel (0) target = $region53
    $region52: #{tpu_custom_call.1} parent=1 // pred_region
      %s1011 = ssub.s32 16, 16
      %1012 = vsyncadd [#allocation6], %s1011
      %1015 = dma.smem_to_hbm [#allocation13], 16, %s8, [#allocation6]
    $region53: #{tpu_custom_call.1} parent=1 // pred_fallthru
      _
    // Predicated region
    $region54: #{tpu_custom_call.1} parent=1 // pred_check
      _
    $region55: #{tpu_custom_call.1} parent=1 // pred_check_branch
      %1017 = sbr.rel (0) target = $region57
    $region56: #{tpu_custom_call.1} parent=1 // pred_region
      %s1019 = ssub.s32 16, 16
      %1020 = vsyncadd [#allocation15], %s1019
      %1023 = dma.smem_to_hbm [#allocation14], 16, %s9, [#allocation15]
    $region57: #{tpu_custom_call.1} parent=1 // pred_fallthru
      _
    // Predicated region
    $region58: #{tpu_custom_call.1} parent=1 // pred_check
      _
    $region59: #{tpu_custom_call.1} parent=1 // pred_check_branch
      %1025 = sbr.rel (0) target = $region61
    $region60: #{tpu_custom_call.1} parent=1 // pred_region
      %1026 = dma.done [#allocation5], 256
    $region61: #{tpu_custom_call.1} parent=1 // pred_fallthru
      _
    // Predicated region
    $region62: #{tpu_custom_call.1} parent=1 // pred_check
      _
    $region63: #{tpu_custom_call.1} parent=1 // pred_check_branch
      %1028 = sbr.rel (0) target = $region65
    $region64: #{tpu_custom_call.1} parent=1 // pred_region
      %1029 = dma.done [#allocation6], 16
    $region65: #{tpu_custom_call.1} parent=1 // pred_fallthru
      _
    // Predicated region
    $region66: #{tpu_custom_call.1} parent=1 // pred_check
      _
    $region67: #{tpu_custom_call.1} parent=1 // pred_check_branch
      %1031 = sbr.rel (0) target = $region69
    $region68: #{tpu_custom_call.1} parent=1 // pred_region
      %1032 = dma.done [#allocation15], 16
    $region69: #{tpu_custom_call.1} parent=1 // pred_fallthru
      _
    %1033 = sfence
    %1034 = vsyncpa [#allocation4], 1
    %1035 = vsyncpa [#allocation8], 1
    %1036 = vsyncpa [#allocation11], 1
    %1037 = vsyncpa [#allocation5], 1
    %1038 = vsyncpa [#allocation6], 1
    %1039 = vsyncpa [#allocation15], 1

</llo_original>
